<compile_context>
chip_gen: v7x
topology: tpu7x:2x2x1
jax: 0.10.0
libtpu: 0.0.40
codegen_flags: <defaults>
</compile_context>

<pallas_src>
import functools

import jax
import jax.numpy as jnp
from jax import lax
from jax.experimental import pallas as pl
from jax.experimental.pallas import tpu as pltpu


def _code_switch_tile_kernel(e_ref, k_ref, a_ref, t_ref, ratio_ref, out_ref, *,
                             temperature, tile_b, batch_real, matmul_mode):
    inv_t = 1.0 / temperature
    Tb = tile_b
    i = pl.program_id(0)
    row0 = pl.multiple_of(i * Tb, Tb)          # first anchor example of this tile

    def norm_rows(x):
        x = x.astype(jnp.float32)
        ss = jnp.sum(x * x, axis=1, keepdims=True)
        # torch F.normalize(p=2, eps=1e-12)  ==  x * rsqrt(max(|x|^2, 1e-24))
        return x * lax.rsqrt(jnp.maximum(ss, 1e-24))

    # Resident column tensors (all Bp examples, one version each), normalized.
    # Redundant per-tile normalization is ~1/(8*Tb) of the matmul flops: negligible.
    E = norm_rows(e_ref[...])                  # (Bp, Dp)
    K = norm_rows(k_ref[...])
    A = norm_rows(a_ref[...])
    T = norm_rows(t_ref[...])
    Bp = E.shape[0]

    # Anchor tiles for this grid step (Tb examples x 4 versions), normalized.
    Et = norm_rows(e_ref[pl.ds(row0, Tb), :])  # (Tb, Dp)
    Kt = norm_rows(k_ref[pl.ds(row0, Tb), :])
    At = norm_rows(a_ref[pl.ds(row0, Tb), :])
    Tt = norm_rows(t_ref[pl.ds(row0, Tb), :])

    # ---- positives: per-example dots between version tiles (exact, mask-free) ----
    def pos(a, b):                             # exp((<a_i,b_i> - 1) / temperature)
        d = jnp.sum(a * b, axis=1, keepdims=True)
        return jnp.exp((d - 1.0) * inv_t)

    p_ek, p_ea, p_et = pos(Et, Kt), pos(Et, At), pos(Et, Tt)
    p_ka, p_kt = pos(Kt, At), pos(Kt, Tt)
    p_at = pos(At, Tt)
    num = (p_ek + p_ea + p_et,                 # anchor = english
           p_ek + p_ka + p_kt,                 # anchor = korean
           p_ea + p_ka + p_at,                 # anchor = etok
           p_et + p_kt + p_at)                 # anchor = ktoe

    # ---- negatives: stream one (4Tb, Bp) block per column version ----------------
    anchors = jnp.concatenate([Et, Kt, At, Tt], axis=0)            # (4Tb, Dp)
    lhs = anchors * inv_t                                           # fold 1/temperature

    # keep[j, c] = 1 iff column c is a real example different from anchor example.
    ex = row0 + lax.broadcasted_iota(jnp.int32, (Tb, Bp), 0)
    col = lax.broadcasted_iota(jnp.int32, (Tb, Bp), 1)
    keep = jnp.logical_and(col != ex, col < batch_real).astype(jnp.float32)
    keep4 = jnp.concatenate([keep, keep, keep, keep], axis=0)       # (4Tb, Bp)

    dn = (((1,), (1,)), ((), ()))              # contract dim 1 of both (A @ B^T)

    def mm(a, b):
        if matmul_mode == "f32":
            return lax.dot_general(a, b, dn, preferred_element_type=jnp.float32)
        # compensated bf16 (bf16x3): x = hi + lo, drop only the lo*lo term
        a_hi = a.astype(jnp.bfloat16)
        a_lo = (a - a_hi.astype(jnp.float32)).astype(jnp.bfloat16)
        b_hi = b.astype(jnp.bfloat16)
        b_lo = (b - b_hi.astype(jnp.float32)).astype(jnp.bfloat16)
        s = lax.dot_general(a_hi, b_hi, dn, preferred_element_type=jnp.float32)
        s = s + lax.dot_general(a_lo, b_hi, dn, preferred_element_type=jnp.float32)
        s = s + lax.dot_general(a_hi, b_lo, dn, preferred_element_type=jnp.float32)
        return s

    # Rows are unit norm -> sim <= 1/temperature; subtract that known max inside the
    # exp (overflow-safe; the shift cancels in log(num+neg) - log(num)).
    neg_all = jnp.zeros((4 * Tb, 1), jnp.float32)
    for C in (E, K, A, T):
        s = mm(lhs, C)                                              # (4Tb, Bp)
        neg_all = neg_all + jnp.sum(jnp.exp(s - inv_t) * keep4,
                                    axis=1, keepdims=True)

    per_ex = jnp.zeros((Tb, 1), jnp.float32)
    for v in range(4):
        neg_v = neg_all[v * Tb:(v + 1) * Tb, :]                     # (Tb, 1)
        # -log(num / (num + neg)) = log(num + neg) - log(num); cancellation-free
        # since all terms are positive additions.
        per_ex = per_ex + (jnp.log(num[v] + neg_v) - jnp.log(num[v]))

    # ---- code-switch regularization ----------------------------------------------
    r = ratio_ref[...]                                              # (Tb, 1)
    etok_t = r * Et + (1.0 - r) * Kt
    ktoe_t = (1.0 - r) * Et + r * Kt
    reg = (jnp.sqrt(jnp.sum((At - etok_t) ** 2, axis=1, keepdims=True)) +
           jnp.sqrt(jnp.sum((Tt - ktoe_t) ** 2, axis=1, keepdims=True)))

    valid = (row0 + lax.broadcasted_iota(jnp.int32, (Tb, 1), 0)) < batch_real
    per_ex = jnp.where(valid, per_ex + 0.5 * reg, 0.0)
    out_ref[...] = jnp.broadcast_to(per_ex, (Tb, 128))              # lane-dense output


def _vmem_limit_bytes(Bp, Dp, Tb, matmul_mode):
    f32 = 4
    est = (4 * Bp * Dp * f32 * 2                                     # resident inputs (2 bufs)
           + 4 * Bp * Dp * f32                                       # normalized copies
           + (3 if matmul_mode != "f32" else 1) * 4 * Tb * Dp * f32  # anchors (+ hi/lo)
           + (6 if matmul_mode != "f32" else 3) * 4 * Tb * Bp * f32  # sim/exp/mask blocks
           + 4 * Tb * 128 * f32
           + (2 << 20))
    est = int(est * 1.5)
    cap = 128 * 1024 * 1024
    try:
        cap = int(pltpu.get_tpu_info().vmem_capacity_bytes)
    except Exception:
        pass
    return max(16 * 1024 * 1024, min(est, cap))


def code_switch_loss(embeddings_dict, cs_ratios, temperature=0.1, matmul_mode="f32"):
    """matmul_mode: "f32" (exact) or "bf16x3" (compensated bf16 MXU path)."""
    eng = embeddings_dict["english"].astype(jnp.float32)
    kor = embeddings_dict["korean"].astype(jnp.float32)
    etk = embeddings_dict["etok"].astype(jnp.float32)
    kte = embeddings_dict["ktoe"].astype(jnp.float32)
    B, D = eng.shape
    Bp = ((B + 7) // 8) * 8                    # sublane multiple
    Dp = ((D + 127) // 128) * 128              # lane / MXU contraction multiple

    def pad(x):
        if (Bp, Dp) == (B, D):
            return x
        return jnp.pad(x, ((0, Bp - B), (0, Dp - D)))

    ratios = cs_ratios.astype(jnp.float32).reshape(B, 1)
    if Bp != B:
        ratios = jnp.pad(ratios, ((0, Bp - B), (0, 0)))

    # Anchor-example tile: largest divisor of Bp that is a multiple of 8, <= 128.
    Tb = 8
    for cand in range(min(Bp, 128), 7, -8):
        if Bp % cand == 0:
            Tb = cand
            break
    grid = (Bp // Tb,)

    kernel = functools.partial(
        _code_switch_tile_kernel, temperature=float(temperature),
        tile_b=Tb, batch_real=B, matmul_mode=matmul_mode)

    resident = pl.BlockSpec((Bp, Dp), lambda i: (0, 0))   # stays in VMEM across tiles

    out = pl.pallas_call(
        kernel,
        grid=grid,
        out_shape=jax.ShapeDtypeStruct((Bp, 128), jnp.float32),
        in_specs=[resident, resident, resident, resident,
                  pl.BlockSpec((Tb, 1), lambda i: (i, 0))],
        out_specs=pl.BlockSpec((Tb, 128), lambda i: (i, 0)),
        compiler_params=pltpu.CompilerParams(
            dimension_semantics=("parallel",),
            vmem_limit_bytes=_vmem_limit_bytes(Bp, Dp, Tb, matmul_mode)),
    )(pad(eng), pad(kor), pad(etk), pad(kte), ratios)

    return jnp.sum(out[:, 0]) / B


# ---------------- pure-JAX reference (direct loop translation) -------------------
def _l2_normalize_ref(x):
    n = jnp.sqrt(jnp.sum(x * x, axis=1, keepdims=True))
    return x / jnp.maximum(n, 1e-12)


def code_switch_loss_ref(embeddings_dict, cs_ratios, temperature=0.1):
    E = _l2_normalize_ref(embeddings_dict["english"].astype(jnp.float32))
    A = _l2_normalize_ref(embeddings_dict["etok"].astype(jnp.float32))
    T = _l2_normalize_ref(embeddings_dict["ktoe"].astype(jnp.float32))
    K = _l2_normalize_ref(embeddings_dict["korean"].astype(jnp.float32))
    B = E.shape[0]

    contrastive = 0.0
    for i in range(B):
        versions = [E[i:i + 1], K[i:i + 1], A[i:i + 1], T[i:i + 1]]
        negs = []
        for j in range(B):
            if j != i:
                negs += [E[j:j + 1], K[j:j + 1], A[j:j + 1], T[j:j + 1]]
        neg_stack = jnp.concatenate(negs, axis=0)
        for idx, anchor in enumerate(versions):
            positives = jnp.concatenate(
                [v for vi, v in enumerate(versions) if vi != idx], axis=0)
            pos_sim = anchor @ positives.T / temperature
            neg_sim = anchor @ neg_stack.T / temperature
            numer = jnp.sum(jnp.exp(pos_sim))
            denom = numer + jnp.sum(jnp.exp(neg_sim))
            contrastive += -jnp.log(numer / denom)

    cs_reg = 0.0
    for i in range(B):
        r = cs_ratios[i]
        etok_target = r * E[i] + (1 - r) * K[i]
        ktoe_target = (1 - r) * E[i] + r * K[i]
        cs_reg += jnp.linalg.norm(A[i] - etok_target) + jnp.linalg.norm(T[i] - ktoe_target)

    return (contrastive + 0.5 * cs_reg) / B


if __name__ == "__main__":
    B, D = 4, 32  # batch_size=4, hidden=32
    key = jax.random.PRNGKey(0)
    k1, k2, k3, k4, k5 = jax.random.split(key, 5)
    embeddings = {
        "english": jax.random.normal(k1, (B, D), dtype=jnp.float32),
        "etok":    jax.random.normal(k2, (B, D), dtype=jnp.float32),
        "ktoe":    jax.random.normal(k3, (B, D), dtype=jnp.float32),
        "korean":  jax.random.normal(k4, (B, D), dtype=jnp.float32),
    }
    cs_ratios = jax.random.uniform(k5, (B,), dtype=jnp.float32)

    ref = jax.block_until_ready(code_switch_loss_ref(embeddings, cs_ratios, temperature=0.1))

    # Exact (f32 MXU) path: must match the reference tightly.
    loss = jax.block_until_ready(
        code_switch_loss(embeddings, cs_ratios, temperature=0.1, matmul_mode="f32"))
    assert jnp.allclose(loss, ref, rtol=1e-4, atol=1e-4), (loss, ref)

    # Compensated bf16 MXU path: fast, loose check only.
    loss_bf = jax.block_until_ready(
        code_switch_loss(embeddings, cs_ratios, temperature=0.1, matmul_mode="bf16x3"))
    assert jnp.allclose(loss_bf, ref, rtol=1e-2, atol=1e-2), (loss_bf, ref)

    print("KERNEL_OK")
</pallas_src>

<mosaic_0001>
module attributes {stable_mosaic.version = 11 : i64} {
  func.func @_code_switch_tile_kernel(%arg0: i32, %arg1: memref<8x128xf32, #tpu.memory_space<vmem>>, %arg2: memref<8x128xf32, #tpu.memory_space<vmem>>, %arg3: memref<8x128xf32, #tpu.memory_space<vmem>>, %arg4: memref<8x128xf32, #tpu.memory_space<vmem>>, %arg5: memref<8x1xf32, #tpu.memory_space<vmem>>, %arg6: memref<8x128xf32, #tpu.memory_space<vmem>>) attributes {dimension_semantics = [#tpu.dimension_semantics<parallel>], iteration_bounds = array<i64: 1>, scalar_prefetch = 0 : i64, scratch_operands = 0 : i64, tpu.core_type = #tpu.core_type<tc>, window_params = [{pipeline_mode = #tpu.pipeline_mode<synchronous>, transform_indices = @transform_0, window_bounds = array<i64: 8, 128>}, {pipeline_mode = #tpu.pipeline_mode<synchronous>, transform_indices = @transform_1, window_bounds = array<i64: 8, 128>}, {pipeline_mode = #tpu.pipeline_mode<synchronous>, transform_indices = @transform_2, window_bounds = array<i64: 8, 128>}, {pipeline_mode = #tpu.pipeline_mode<synchronous>, transform_indices = @transform_3, window_bounds = array<i64: 8, 128>}, {transform_indices = @transform_4, window_bounds = array<i64: 8, 1>}, {transform_indices = @transform_5, window_bounds = array<i64: 8, 128>}]} {
    %c8_i32 = arith.constant 8 : i32
    %0 = arith.muli %arg0, %c8_i32 : i32
    %1 = tpu.assume_multiple %0, 8 : i32
    %c0 = arith.constant 0 : index
    %c0_0 = arith.constant 0 : index
    %2 = vector.load %arg1[%c0, %c0_0] : memref<8x128xf32, #tpu.memory_space<vmem>>, vector<8x128xf32>
    %3 = arith.mulf %2, %2 : vector<8x128xf32>
    %cst = arith.constant dense<0.000000e+00> : vector<8xf32>
    %4 = vector.multi_reduction <add>, %3, %cst [1] : vector<8x128xf32> to vector<8xf32>
    %5 = vector.shape_cast %4 : vector<8xf32> to vector<8x1xf32>
    %cst_1 = arith.constant 1.000000e-24 : f32
    %6 = vector.broadcast %cst_1 : f32 to vector<8x1xf32>
    %7 = arith.maximumf %5, %6 : vector<8x1xf32>
    %8 = math.rsqrt %7 : vector<8x1xf32>
    %9 = vector.broadcast %8 : vector<8x1xf32> to vector<8x128xf32>
    %10 = arith.mulf %2, %9 : vector<8x128xf32>
    %c0_2 = arith.constant 0 : index
    %c0_3 = arith.constant 0 : index
    %11 = vector.load %arg2[%c0_2, %c0_3] : memref<8x128xf32, #tpu.memory_space<vmem>>, vector<8x128xf32>
    %12 = arith.mulf %11, %11 : vector<8x128xf32>
    %cst_4 = arith.constant dense<0.000000e+00> : vector<8xf32>
    %13 = vector.multi_reduction <add>, %12, %cst_4 [1] : vector<8x128xf32> to vector<8xf32>
    %14 = vector.shape_cast %13 : vector<8xf32> to vector<8x1xf32>
    %cst_5 = arith.constant 1.000000e-24 : f32
    %15 = vector.broadcast %cst_5 : f32 to vector<8x1xf32>
    %16 = arith.maximumf %14, %15 : vector<8x1xf32>
    %17 = math.rsqrt %16 : vector<8x1xf32>
    %18 = vector.broadcast %17 : vector<8x1xf32> to vector<8x128xf32>
    %19 = arith.mulf %11, %18 : vector<8x128xf32>
    %c0_6 = arith.constant 0 : index
    %c0_7 = arith.constant 0 : index
    %20 = vector.load %arg3[%c0_6, %c0_7] : memref<8x128xf32, #tpu.memory_space<vmem>>, vector<8x128xf32>
    %21 = arith.mulf %20, %20 : vector<8x128xf32>
    %cst_8 = arith.constant dense<0.000000e+00> : vector<8xf32>
    %22 = vector.multi_reduction <add>, %21, %cst_8 [1] : vector<8x128xf32> to vector<8xf32>
    %23 = vector.shape_cast %22 : vector<8xf32> to vector<8x1xf32>
    %cst_9 = arith.constant 1.000000e-24 : f32
    %24 = vector.broadcast %cst_9 : f32 to vector<8x1xf32>
    %25 = arith.maximumf %23, %24 : vector<8x1xf32>
    %26 = math.rsqrt %25 : vector<8x1xf32>
    %27 = vector.broadcast %26 : vector<8x1xf32> to vector<8x128xf32>
    %28 = arith.mulf %20, %27 : vector<8x128xf32>
    %c0_10 = arith.constant 0 : index
    %c0_11 = arith.constant 0 : index
    %29 = vector.load %arg4[%c0_10, %c0_11] : memref<8x128xf32, #tpu.memory_space<vmem>>, vector<8x128xf32>
    %30 = arith.mulf %29, %29 : vector<8x128xf32>
    %cst_12 = arith.constant dense<0.000000e+00> : vector<8xf32>
    %31 = vector.multi_reduction <add>, %30, %cst_12 [1] : vector<8x128xf32> to vector<8xf32>
    %32 = vector.shape_cast %31 : vector<8xf32> to vector<8x1xf32>
    %cst_13 = arith.constant 1.000000e-24 : f32
    %33 = vector.broadcast %cst_13 : f32 to vector<8x1xf32>
    %34 = arith.maximumf %32, %33 : vector<8x1xf32>
    %35 = math.rsqrt %34 : vector<8x1xf32>
    %36 = vector.broadcast %35 : vector<8x1xf32> to vector<8x128xf32>
    %37 = arith.mulf %29, %36 : vector<8x128xf32>
    %38 = arith.index_cast %1 : i32 to index
    %c0_14 = arith.constant 0 : index
    %39 = vector.load %arg1[%38, %c0_14] : memref<8x128xf32, #tpu.memory_space<vmem>>, vector<8x128xf32>
    %40 = arith.mulf %39, %39 : vector<8x128xf32>
    %cst_15 = arith.constant dense<0.000000e+00> : vector<8xf32>
    %41 = vector.multi_reduction <add>, %40, %cst_15 [1] : vector<8x128xf32> to vector<8xf32>
    %42 = vector.shape_cast %41 : vector<8xf32> to vector<8x1xf32>
    %cst_16 = arith.constant 1.000000e-24 : f32
    %43 = vector.broadcast %cst_16 : f32 to vector<8x1xf32>
    %44 = arith.maximumf %42, %43 : vector<8x1xf32>
    %45 = math.rsqrt %44 : vector<8x1xf32>
    %46 = vector.broadcast %45 : vector<8x1xf32> to vector<8x128xf32>
    %47 = arith.mulf %39, %46 : vector<8x128xf32>
    %48 = arith.index_cast %1 : i32 to index
    %c0_17 = arith.constant 0 : index
    %49 = vector.load %arg2[%48, %c0_17] : memref<8x128xf32, #tpu.memory_space<vmem>>, vector<8x128xf32>
    %50 = arith.mulf %49, %49 : vector<8x128xf32>
    %cst_18 = arith.constant dense<0.000000e+00> : vector<8xf32>
    %51 = vector.multi_reduction <add>, %50, %cst_18 [1] : vector<8x128xf32> to vector<8xf32>
    %52 = vector.shape_cast %51 : vector<8xf32> to vector<8x1xf32>
    %cst_19 = arith.constant 1.000000e-24 : f32
    %53 = vector.broadcast %cst_19 : f32 to vector<8x1xf32>
    %54 = arith.maximumf %52, %53 : vector<8x1xf32>
    %55 = math.rsqrt %54 : vector<8x1xf32>
    %56 = vector.broadcast %55 : vector<8x1xf32> to vector<8x128xf32>
    %57 = arith.mulf %49, %56 : vector<8x128xf32>
    %58 = arith.index_cast %1 : i32 to index
    %c0_20 = arith.constant 0 : index
    %59 = vector.load %arg3[%58, %c0_20] : memref<8x128xf32, #tpu.memory_space<vmem>>, vector<8x128xf32>
    %60 = arith.mulf %59, %59 : vector<8x128xf32>
    %cst_21 = arith.constant dense<0.000000e+00> : vector<8xf32>
    %61 = vector.multi_reduction <add>, %60, %cst_21 [1] : vector<8x128xf32> to vector<8xf32>
    %62 = vector.shape_cast %61 : vector<8xf32> to vector<8x1xf32>
    %cst_22 = arith.constant 1.000000e-24 : f32
    %63 = vector.broadcast %cst_22 : f32 to vector<8x1xf32>
    %64 = arith.maximumf %62, %63 : vector<8x1xf32>
    %65 = math.rsqrt %64 : vector<8x1xf32>
    %66 = vector.broadcast %65 : vector<8x1xf32> to vector<8x128xf32>
    %67 = arith.mulf %59, %66 : vector<8x128xf32>
    %68 = arith.index_cast %1 : i32 to index
    %c0_23 = arith.constant 0 : index
    %69 = vector.load %arg4[%68, %c0_23] : memref<8x128xf32, #tpu.memory_space<vmem>>, vector<8x128xf32>
    %70 = arith.mulf %69, %69 : vector<8x128xf32>
    %cst_24 = arith.constant dense<0.000000e+00> : vector<8xf32>
    %71 = vector.multi_reduction <add>, %70, %cst_24 [1] : vector<8x128xf32> to vector<8xf32>
    %72 = vector.shape_cast %71 : vector<8xf32> to vector<8x1xf32>
    %cst_25 = arith.constant 1.000000e-24 : f32
    %73 = vector.broadcast %cst_25 : f32 to vector<8x1xf32>
    %74 = arith.maximumf %72, %73 : vector<8x1xf32>
    %75 = math.rsqrt %74 : vector<8x1xf32>
    %76 = vector.broadcast %75 : vector<8x1xf32> to vector<8x128xf32>
    %77 = arith.mulf %69, %76 : vector<8x128xf32>
    %78 = arith.mulf %47, %57 : vector<8x128xf32>
    %cst_26 = arith.constant dense<0.000000e+00> : vector<8xf32>
    %79 = vector.multi_reduction <add>, %78, %cst_26 [1] : vector<8x128xf32> to vector<8xf32>
    %80 = vector.shape_cast %79 : vector<8xf32> to vector<8x1xf32>
    %cst_27 = arith.constant 1.000000e+00 : f32
    %81 = vector.broadcast %cst_27 : f32 to vector<8x1xf32>
    %82 = arith.subf %80, %81 : vector<8x1xf32>
    %cst_28 = arith.constant 1.000000e+01 : f32
    %83 = vector.broadcast %cst_28 : f32 to vector<8x1xf32>
    %84 = arith.mulf %82, %83 : vector<8x1xf32>
    %85 = math.exp %84 : vector<8x1xf32>
    %86 = arith.mulf %47, %67 : vector<8x128xf32>
    %cst_29 = arith.constant dense<0.000000e+00> : vector<8xf32>
    %87 = vector.multi_reduction <add>, %86, %cst_29 [1] : vector<8x128xf32> to vector<8xf32>
    %88 = vector.shape_cast %87 : vector<8xf32> to vector<8x1xf32>
    %cst_30 = arith.constant 1.000000e+00 : f32
    %89 = vector.broadcast %cst_30 : f32 to vector<8x1xf32>
    %90 = arith.subf %88, %89 : vector<8x1xf32>
    %cst_31 = arith.constant 1.000000e+01 : f32
    %91 = vector.broadcast %cst_31 : f32 to vector<8x1xf32>
    %92 = arith.mulf %90, %91 : vector<8x1xf32>
    %93 = math.exp %92 : vector<8x1xf32>
    %94 = arith.mulf %47, %77 : vector<8x128xf32>
    %cst_32 = arith.constant dense<0.000000e+00> : vector<8xf32>
    %95 = vector.multi_reduction <add>, %94, %cst_32 [1] : vector<8x128xf32> to vector<8xf32>
    %96 = vector.shape_cast %95 : vector<8xf32> to vector<8x1xf32>
    %cst_33 = arith.constant 1.000000e+00 : f32
    %97 = vector.broadcast %cst_33 : f32 to vector<8x1xf32>
    %98 = arith.subf %96, %97 : vector<8x1xf32>
    %cst_34 = arith.constant 1.000000e+01 : f32
    %99 = vector.broadcast %cst_34 : f32 to vector<8x1xf32>
    %100 = arith.mulf %98, %99 : vector<8x1xf32>
    %101 = math.exp %100 : vector<8x1xf32>
    %102 = arith.mulf %57, %67 : vector<8x128xf32>
    %cst_35 = arith.constant dense<0.000000e+00> : vector<8xf32>
    %103 = vector.multi_reduction <add>, %102, %cst_35 [1] : vector<8x128xf32> to vector<8xf32>
    %104 = vector.shape_cast %103 : vector<8xf32> to vector<8x1xf32>
    %cst_36 = arith.constant 1.000000e+00 : f32
    %105 = vector.broadcast %cst_36 : f32 to vector<8x1xf32>
    %106 = arith.subf %104, %105 : vector<8x1xf32>
    %cst_37 = arith.constant 1.000000e+01 : f32
    %107 = vector.broadcast %cst_37 : f32 to vector<8x1xf32>
    %108 = arith.mulf %106, %107 : vector<8x1xf32>
    %109 = math.exp %108 : vector<8x1xf32>
    %110 = arith.mulf %57, %77 : vector<8x128xf32>
    %cst_38 = arith.constant dense<0.000000e+00> : vector<8xf32>
    %111 = vector.multi_reduction <add>, %110, %cst_38 [1] : vector<8x128xf32> to vector<8xf32>
    %112 = vector.shape_cast %111 : vector<8xf32> to vector<8x1xf32>
    %cst_39 = arith.constant 1.000000e+00 : f32
    %113 = vector.broadcast %cst_39 : f32 to vector<8x1xf32>
    %114 = arith.subf %112, %113 : vector<8x1xf32>
    %cst_40 = arith.constant 1.000000e+01 : f32
    %115 = vector.broadcast %cst_40 : f32 to vector<8x1xf32>
    %116 = arith.mulf %114, %115 : vector<8x1xf32>
    %117 = math.exp %116 : vector<8x1xf32>
    %118 = arith.mulf %67, %77 : vector<8x128xf32>
    %cst_41 = arith.constant dense<0.000000e+00> : vector<8xf32>
    %119 = vector.multi_reduction <add>, %118, %cst_41 [1] : vector<8x128xf32> to vector<8xf32>
    %120 = vector.shape_cast %119 : vector<8xf32> to vector<8x1xf32>
    %cst_42 = arith.constant 1.000000e+00 : f32
    %121 = vector.broadcast %cst_42 : f32 to vector<8x1xf32>
    %122 = arith.subf %120, %121 : vector<8x1xf32>
    %cst_43 = arith.constant 1.000000e+01 : f32
    %123 = vector.broadcast %cst_43 : f32 to vector<8x1xf32>
    %124 = arith.mulf %122, %123 : vector<8x1xf32>
    %125 = math.exp %124 : vector<8x1xf32>
    %126 = arith.addf %85, %93 : vector<8x1xf32>
    %127 = arith.addf %126, %101 : vector<8x1xf32>
    %128 = arith.addf %85, %109 : vector<8x1xf32>
    %129 = arith.addf %128, %117 : vector<8x1xf32>
    %130 = arith.addf %93, %109 : vector<8x1xf32>
    %131 = arith.addf %130, %125 : vector<8x1xf32>
    %132 = arith.addf %101, %117 : vector<8x1xf32>
    %133 = arith.addf %132, %125 : vector<8x1xf32>
    %134 = tpu.concatenate %47, %57, %67, %77 in 0 : vector<8x128xf32>, vector<8x128xf32>, vector<8x128xf32>, vector<8x128xf32> -> vector<32x128xf32>
    %cst_44 = arith.constant 1.000000e+01 : f32
    %135 = vector.broadcast %cst_44 : f32 to vector<32x128xf32>
    %136 = arith.mulf %134, %135 : vector<32x128xf32>
    %137 = tpu.iota {dimensions = array<i32: 0>} : vector<8x8xi32>
    %138 = vector.broadcast %1 : i32 to vector<8x8xi32>
    %139 = arith.addi %138, %137 : vector<8x8xi32>
    %140 = tpu.iota {dimensions = array<i32: 1>} : vector<8x8xi32>
    %141 = arith.cmpi ne, %140, %139 : vector<8x8xi32>
    %c4_i32 = arith.constant 4 : i32
    %142 = vector.broadcast %c4_i32 : i32 to vector<8x8xi32>
    %143 = arith.cmpi slt, %140, %142 : vector<8x8xi32>
    %144 = arith.andi %141, %143 : vector<8x8xi1>
    %145 = arith.extui %144 : vector<8x8xi1> to vector<8x8xi32>
    %146 = arith.sitofp %145 : vector<8x8xi32> to vector<8x8xf32>
    %147 = tpu.concatenate %146, %146, %146, %146 in 0 : vector<8x8xf32>, vector<8x8xf32>, vector<8x8xf32>, vector<8x8xf32> -> vector<32x8xf32>
    %cst_45 = arith.constant 0.000000e+00 : f32
    %148 = vector.broadcast %cst_45 : f32 to vector<32x1xf32>
    %cst_46 = arith.constant dense<0.000000e+00> : vector<32x8xf32>
    %149 = tpu.matmul %136, %10, %cst_46 {dimension_numbers = #tpu.dot_dimension_numbers<[1], [1], [0], [0], [0, 0, 1, 0], [], []>} : vector<32x128xf32>, vector<8x128xf32>, vector<32x8xf32> -> vector<32x8xf32>
    %cst_47 = arith.constant 1.000000e+01 : f32
    %150 = vector.broadcast %cst_47 : f32 to vector<32x8xf32>
    %151 = arith.subf %149, %150 : vector<32x8xf32>
    %152 = math.exp %151 : vector<32x8xf32>
    %153 = arith.mulf %152, %147 : vector<32x8xf32>
    %cst_48 = arith.constant dense<0.000000e+00> : vector<32xf32>
    %154 = vector.multi_reduction <add>, %153, %cst_48 [1] : vector<32x8xf32> to vector<32xf32>
    %155 = vector.shape_cast %154 : vector<32xf32> to vector<32x1xf32>
    %156 = arith.addf %148, %155 : vector<32x1xf32>
    %cst_49 = arith.constant dense<0.000000e+00> : vector<32x8xf32>
    %157 = tpu.matmul %136, %19, %cst_49 {dimension_numbers = #tpu.dot_dimension_numbers<[1], [1], [0], [0], [0, 0, 1, 0], [], []>} : vector<32x128xf32>, vector<8x128xf32>, vector<32x8xf32> -> vector<32x8xf32>
    %cst_50 = arith.constant 1.000000e+01 : f32
    %158 = vector.broadcast %cst_50 : f32 to vector<32x8xf32>
    %159 = arith.subf %157, %158 : vector<32x8xf32>
    %160 = math.exp %159 : vector<32x8xf32>
    %161 = arith.mulf %160, %147 : vector<32x8xf32>
    %cst_51 = arith.constant dense<0.000000e+00> : vector<32xf32>
    %162 = vector.multi_reduction <add>, %161, %cst_51 [1] : vector<32x8xf32> to vector<32xf32>
    %163 = vector.shape_cast %162 : vector<32xf32> to vector<32x1xf32>
    %164 = arith.addf %156, %163 : vector<32x1xf32>
    %cst_52 = arith.constant dense<0.000000e+00> : vector<32x8xf32>
    %165 = tpu.matmul %136, %28, %cst_52 {dimension_numbers = #tpu.dot_dimension_numbers<[1], [1], [0], [0], [0, 0, 1, 0], [], []>} : vector<32x128xf32>, vector<8x128xf32>, vector<32x8xf32> -> vector<32x8xf32>
    %cst_53 = arith.constant 1.000000e+01 : f32
    %166 = vector.broadcast %cst_53 : f32 to vector<32x8xf32>
    %167 = arith.subf %165, %166 : vector<32x8xf32>
    %168 = math.exp %167 : vector<32x8xf32>
    %169 = arith.mulf %168, %147 : vector<32x8xf32>
    %cst_54 = arith.constant dense<0.000000e+00> : vector<32xf32>
    %170 = vector.multi_reduction <add>, %169, %cst_54 [1] : vector<32x8xf32> to vector<32xf32>
    %171 = vector.shape_cast %170 : vector<32xf32> to vector<32x1xf32>
    %172 = arith.addf %164, %171 : vector<32x1xf32>
    %cst_55 = arith.constant dense<0.000000e+00> : vector<32x8xf32>
    %173 = tpu.matmul %136, %37, %cst_55 {dimension_numbers = #tpu.dot_dimension_numbers<[1], [1], [0], [0], [0, 0, 1, 0], [], []>} : vector<32x128xf32>, vector<8x128xf32>, vector<32x8xf32> -> vector<32x8xf32>
    %cst_56 = arith.constant 1.000000e+01 : f32
    %174 = vector.broadcast %cst_56 : f32 to vector<32x8xf32>
    %175 = arith.subf %173, %174 : vector<32x8xf32>
    %176 = math.exp %175 : vector<32x8xf32>
    %177 = arith.mulf %176, %147 : vector<32x8xf32>
    %cst_57 = arith.constant dense<0.000000e+00> : vector<32xf32>
    %178 = vector.multi_reduction <add>, %177, %cst_57 [1] : vector<32x8xf32> to vector<32xf32>
    %179 = vector.shape_cast %178 : vector<32xf32> to vector<32x1xf32>
    %180 = arith.addf %172, %179 : vector<32x1xf32>
    %cst_58 = arith.constant 0.000000e+00 : f32
    %181 = vector.broadcast %cst_58 : f32 to vector<8x1xf32>
    %182 = vector.extract_strided_slice %180 {offsets = [0, 0], sizes = [8, 1], strides = [1, 1]} : vector<32x1xf32> to vector<8x1xf32>
    %183 = arith.addf %127, %182 : vector<8x1xf32>
    %184 = math.log %183 : vector<8x1xf32>
    %185 = math.log %127 : vector<8x1xf32>
    %186 = arith.subf %184, %185 : vector<8x1xf32>
    %187 = arith.addf %181, %186 : vector<8x1xf32>
    %188 = vector.extract_strided_slice %180 {offsets = [8, 0], sizes = [8, 1], strides = [1, 1]} : vector<32x1xf32> to vector<8x1xf32>
    %189 = arith.addf %129, %188 : vector<8x1xf32>
    %190 = math.log %189 : vector<8x1xf32>
    %191 = math.log %129 : vector<8x1xf32>
    %192 = arith.subf %190, %191 : vector<8x1xf32>
    %193 = arith.addf %187, %192 : vector<8x1xf32>
    %194 = vector.extract_strided_slice %180 {offsets = [16, 0], sizes = [8, 1], strides = [1, 1]} : vector<32x1xf32> to vector<8x1xf32>
    %195 = arith.addf %131, %194 : vector<8x1xf32>
    %196 = math.log %195 : vector<8x1xf32>
    %197 = math.log %131 : vector<8x1xf32>
    %198 = arith.subf %196, %197 : vector<8x1xf32>
    %199 = arith.addf %193, %198 : vector<8x1xf32>
    %200 = vector.extract_strided_slice %180 {offsets = [24, 0], sizes = [8, 1], strides = [1, 1]} : vector<32x1xf32> to vector<8x1xf32>
    %201 = arith.addf %133, %200 : vector<8x1xf32>
    %202 = math.log %201 : vector<8x1xf32>
    %203 = math.log %133 : vector<8x1xf32>
    %204 = arith.subf %202, %203 : vector<8x1xf32>
    %205 = arith.addf %199, %204 : vector<8x1xf32>
    %c0_59 = arith.constant 0 : index
    %c0_60 = arith.constant 0 : index
    %206 = vector.load %arg5[%c0_59, %c0_60] : memref<8x1xf32, #tpu.memory_space<vmem>>, vector<8x1xf32>
    %207 = vector.broadcast %206 : vector<8x1xf32> to vector<8x128xf32>
    %208 = arith.mulf %207, %47 : vector<8x128xf32>
    %cst_61 = arith.constant 1.000000e+00 : f32
    %209 = vector.broadcast %cst_61 : f32 to vector<8x1xf32>
    %210 = arith.subf %209, %206 : vector<8x1xf32>
    %211 = vector.broadcast %210 : vector<8x1xf32> to vector<8x128xf32>
    %212 = arith.mulf %211, %57 : vector<8x128xf32>
    %213 = arith.addf %208, %212 : vector<8x128xf32>
    %cst_62 = arith.constant 1.000000e+00 : f32
    %214 = vector.broadcast %cst_62 : f32 to vector<8x1xf32>
    %215 = arith.subf %214, %206 : vector<8x1xf32>
    %216 = vector.broadcast %215 : vector<8x1xf32> to vector<8x128xf32>
    %217 = arith.mulf %216, %47 : vector<8x128xf32>
    %218 = vector.broadcast %206 : vector<8x1xf32> to vector<8x128xf32>
    %219 = arith.mulf %218, %57 : vector<8x128xf32>
    %220 = arith.addf %217, %219 : vector<8x128xf32>
    %221 = arith.subf %67, %213 : vector<8x128xf32>
    %222 = arith.mulf %221, %221 : vector<8x128xf32>
    %cst_63 = arith.constant dense<0.000000e+00> : vector<8xf32>
    %223 = vector.multi_reduction <add>, %222, %cst_63 [1] : vector<8x128xf32> to vector<8xf32>
    %224 = vector.shape_cast %223 : vector<8xf32> to vector<8x1xf32>
    %225 = math.sqrt %224 : vector<8x1xf32>
    %226 = arith.subf %77, %220 : vector<8x128xf32>
    %227 = arith.mulf %226, %226 : vector<8x128xf32>
    %cst_64 = arith.constant dense<0.000000e+00> : vector<8xf32>
    %228 = vector.multi_reduction <add>, %227, %cst_64 [1] : vector<8x128xf32> to vector<8xf32>
    %229 = vector.shape_cast %228 : vector<8xf32> to vector<8x1xf32>
    %230 = math.sqrt %229 : vector<8x1xf32>
    %231 = arith.addf %225, %230 : vector<8x1xf32>
    %232 = tpu.iota {dimensions = array<i32: 0>} : vector<8x1xi32>
    %233 = vector.broadcast %1 : i32 to vector<8x1xi32>
    %234 = arith.addi %233, %232 : vector<8x1xi32>
    %c4_i32_65 = arith.constant 4 : i32
    %235 = vector.broadcast %c4_i32_65 : i32 to vector<8x1xi32>
    %236 = arith.cmpi slt, %234, %235 : vector<8x1xi32>
    %cst_66 = arith.constant 5.000000e-01 : f32
    %237 = vector.broadcast %cst_66 : f32 to vector<8x1xf32>
    %238 = arith.mulf %237, %231 : vector<8x1xf32>
    %239 = arith.addf %205, %238 : vector<8x1xf32>
    %cst_67 = arith.constant 0.000000e+00 : f32
    %240 = vector.broadcast %cst_67 : f32 to vector<8x1xf32>
    %241 = arith.select %236, %239, %240 : vector<8x1xi1>, vector<8x1xf32>
    %242 = vector.shape_cast %241 : vector<8x1xf32> to vector<8x1xf32>
    %243 = vector.broadcast %242 : vector<8x1xf32> to vector<8x128xf32>
    %c0_68 = arith.constant 0 : index
    %c0_69 = arith.constant 0 : index
    %244 = vector.load %arg6[%c0_68, %c0_69] : memref<8x128xf32, #tpu.memory_space<vmem>>, vector<8x128xf32>
    tpu.vector_store %arg6[%c0_68, %c0_69], %243 {strides = array<i32>} : memref<8x128xf32, #tpu.memory_space<vmem>>, vector<8x128xf32>,
    return
  }
  func.func @transform_0(%arg0: i32) -> (i32, i32) {
    %c0_i32 = arith.constant 0 : i32
    %c0_i32_0 = arith.constant 0 : i32
    %c0_i32_1 = arith.constant 0 : i32
    return %c0_i32, %c0_i32_0 : i32, i32
  }
  func.func @transform_1(%arg0: i32) -> (i32, i32) {
    %c0_i32 = arith.constant 0 : i32
    %c0_i32_0 = arith.constant 0 : i32
    %c0_i32_1 = arith.constant 0 : i32
    return %c0_i32, %c0_i32_0 : i32, i32
  }
  func.func @transform_2(%arg0: i32) -> (i32, i32) {
    %c0_i32 = arith.constant 0 : i32
    %c0_i32_0 = arith.constant 0 : i32
    %c0_i32_1 = arith.constant 0 : i32
    return %c0_i32, %c0_i32_0 : i32, i32
  }
  func.func @transform_3(%arg0: i32) -> (i32, i32) {
    %c0_i32 = arith.constant 0 : i32
    %c0_i32_0 = arith.constant 0 : i32
    %c0_i32_1 = arith.constant 0 : i32
    return %c0_i32, %c0_i32_0 : i32, i32
  }
  func.func @transform_4(%arg0: i32) -> (i32, i32) {
    %c0_i32 = arith.constant 0 : i32
    %c0_i32_0 = arith.constant 0 : i32
    return %arg0, %c0_i32 : i32, i32
  }
  func.func @transform_5(%arg0: i32) -> (i32, i32) {
    %c0_i32 = arith.constant 0 : i32
    %c0_i32_0 = arith.constant 0 : i32
    return %arg0, %c0_i32 : i32, i32
  }
}

</mosaic_0001>

<llo_original>
// kernel: tpu_custom_call.1
$region0: #{tpu_custom_call.1}
  #allocation0 [shape = 'u32[]', space=smem, size = 0x4, offset = 0x4, fixed_abs, tag = 'smem constant byte address 0x4 - core index']
  #allocation1 [shape = 'u32[144,128]{1,0:T(1,128)}', space=vmem, size = 0x12000, scoped, tag = 'internal scratch']
  %s0 = inlined_call_operand.vmem [shape: f32[8,128], index: 0, kind: input, shape index: {}]
  %s1 = inlined_call_operand.hbm [shape: f32[8,128], index: 1, kind: input, shape index: {}]
  %s2 = inlined_call_operand.vmem [shape: f32[8,128], index: 2, kind: input, shape index: {}]
  %s3 = inlined_call_operand.hbm [shape: f32[8,128], index: 3, kind: input, shape index: {}]
  %s4 = inlined_call_operand.vmem [shape: f32[8,1], index: 4, kind: input, shape index: {}]
  %s5 = inlined_call_operand.hbm [shape: f32[8,128], index: 5, kind: output, shape index: {}]
  %s6 = sld [smem:[#allocation0]]
  $region38: #{tpu_custom_call.1} parent=0
    _
  %s8 = ssub.s32 1, %s6
  %s9 = scalar_select 0, %s8, %s6
  $region1: #{tpu_custom_call.1} parent=0
    #allocation2 [shape = 'u8[4096]{0}', space=vmem, size = 0x1000, scoped, tag = 'input window, operand 1, single buffered']
    #allocation3 [shape = 's32[1]{0}', space=sflag, size = 0x4, scoped, tag = 'scoped memory for tpu_custom_call.1']
    #allocation4 [shape = 's32[1]{0}', space=sflag, size = 0x4, scoped, tag = 'scoped memory for tpu_custom_call.1']
    #allocation5 [shape = 'u8[4096]{0}', space=vmem, size = 0x1000, scoped, tag = 'input window, operand 3, single buffered']
    #allocation6 [shape = 's32[1]{0}', space=sflag, size = 0x4, scoped, tag = 'scoped memory for tpu_custom_call.1']
    #allocation7 [shape = 'u8[4096]{0}', space=vmem, size = 0x1000, scoped, tag = 'output window, operand 0, single buffered']
    %10 = vsyncpa [#allocation3], 0
    %11 = vsyncpa [#allocation6], 0
    %12 = vsyncpa [#allocation4], 0
    // Predicated region
    $region2: #{tpu_custom_call.1} parent=1 // pred_check
      _
    $region3: #{tpu_custom_call.1} parent=1 // pred_check_branch
      %14 = sbr.rel (0) target = $region5
    $region4: #{tpu_custom_call.1} parent=1 // pred_region
      _
    $region5: #{tpu_custom_call.1} parent=1 // pred_fallthru
      _
    // Predicated region
    $region6: #{tpu_custom_call.1} parent=1 // pred_check
      _
    $region7: #{tpu_custom_call.1} parent=1 // pred_check_branch
      %16 = sbr.rel (0) target = $region9
    $region8: #{tpu_custom_call.1} parent=1 // pred_region
      %s18 = ssub.s32 128, 128
      %19 = vsyncadd [#allocation3], %s18
      %s21 = sshll.u32 [#allocation2], 4
      %s22 = int_to_ptr.vmem [resolvable:$true] %s21
      %24 = dma.hbm_to_vmem [thread:$0]  %s1, 128, %s22, [#allocation3]
    $region9: #{tpu_custom_call.1} parent=1 // pred_fallthru
      _
    // Predicated region
    $region10: #{tpu_custom_call.1} parent=1 // pred_check
      _
    $region11: #{tpu_custom_call.1} parent=1 // pred_check_branch
      %26 = sbr.rel (0) target = $region13
    $region12: #{tpu_custom_call.1} parent=1 // pred_region
      _
    $region13: #{tpu_custom_call.1} parent=1 // pred_fallthru
      _
    // Predicated region
    $region14: #{tpu_custom_call.1} parent=1 // pred_check
      _
    $region15: #{tpu_custom_call.1} parent=1 // pred_check_branch
      %28 = sbr.rel (0) target = $region17
    $region16: #{tpu_custom_call.1} parent=1 // pred_region
      %s30 = ssub.s32 128, 128
      %31 = vsyncadd [#allocation6], %s30
      %s33 = sshll.u32 [#allocation5], 4
      %s34 = int_to_ptr.vmem [resolvable:$true] %s33
      %36 = dma.hbm_to_vmem [thread:$0]  %s3, 128, %s34, [#allocation6]
    $region17: #{tpu_custom_call.1} parent=1 // pred_fallthru
      _
    // Predicated region
    $region18: #{tpu_custom_call.1} parent=1 // pred_check
      _
    $region19: #{tpu_custom_call.1} parent=1 // pred_check_branch
      %38 = sbr.rel (0) target = $region21
    $region20: #{tpu_custom_call.1} parent=1 // pred_region
      _
    $region21: #{tpu_custom_call.1} parent=1 // pred_fallthru
      _
    // Predicated region
    $region22: #{tpu_custom_call.1} parent=1 // pred_check
      _
    $region23: #{tpu_custom_call.1} parent=1 // pred_check_branch
      %40 = sbr.rel (0) target = $region25
    $region24: #{tpu_custom_call.1} parent=1 // pred_region
      %41 = dma.done [#allocation3], 128
    $region25: #{tpu_custom_call.1} parent=1 // pred_fallthru
      _
    // Predicated region
    $region26: #{tpu_custom_call.1} parent=1 // pred_check
      _
    $region27: #{tpu_custom_call.1} parent=1 // pred_check_branch
      %43 = sbr.rel (0) target = $region29
    $region28: #{tpu_custom_call.1} parent=1 // pred_region
      %44 = dma.done [#allocation6], 128
    $region29: #{tpu_custom_call.1} parent=1 // pred_fallthru
      _
    %s45 = smul.u32 0, 8
    %v46 = vld [vmem:[%s0] sm:$0xff]
    %v47 = vmul.f32 %v46, %v46
    %48 = vadd.xlane.f32.xlu0 %v47
    %v49 = vpop.xlane.xlu0 %48
    %v50 = vmax.f32 %v49, 1e-24
    %v51 = vrsqrt.pop %v50
    %v52 = vmul.f32 %v46, %v51
    %v53 = vld [vmem:[#allocation2] sm:$0xff]
    %v54 = vmul.f32 %v53, %v53
    %55 = vadd.xlane.f32.xlu0 %v54
    %v56 = vpop.xlane.xlu0 %55
    %v57 = vmax.f32 %v56, 1e-24
    %v58 = vrsqrt.pop %v57
    %v59 = vmul.f32 %v53, %v58
    %v60 = vld [vmem:[%s2] sm:$0xff]
    %v61 = vmul.f32 %v60, %v60
    %62 = vadd.xlane.f32.xlu0 %v61
    %v63 = vpop.xlane.xlu0 %62
    %v64 = vmax.f32 %v63, 1e-24
    %v65 = vrsqrt.pop %v64
    %v66 = vmul.f32 %v60, %v65
    %v67 = vld [vmem:[#allocation5] sm:$0xff]
    %v68 = vmul.f32 %v67, %v67
    %69 = vadd.xlane.f32.xlu0 %v68
    %v70 = vpop.xlane.xlu0 %69
    %v71 = vmax.f32 %v70, 1e-24
    %v72 = vrsqrt.pop %v71
    %v73 = vmul.f32 %v67, %v72
    %s74 = scalar_lea.vmem %s0, %s45
    %v75 = vld [vmem:[%s74] sm:$0xff]
    %v76 = vmul.f32 %v75, %v75
    %77 = vadd.xlane.f32.xlu0 %v76
    %v78 = vpop.xlane.xlu0 %77
    %v79 = vmax.f32 %v78, 1e-24
    %v80 = vrsqrt.pop %v79
    %v81 = vmul.f32 %v75, %v80
    %s82 = scalar_lea.vmem [#allocation2], %s45
    %v83 = vld [vmem:[%s82] sm:$0xff]
    %v84 = vmul.f32 %v83, %v83
    %85 = vadd.xlane.f32.xlu0 %v84
    %v86 = vpop.xlane.xlu0 %85
    %v87 = vmax.f32 %v86, 1e-24
    %v88 = vrsqrt.pop %v87
    %v89 = vmul.f32 %v83, %v88
    %s90 = scalar_lea.vmem %s2, %s45
    %v91 = vld [vmem:[%s90] sm:$0xff]
    %v92 = vmul.f32 %v91, %v91
    %93 = vadd.xlane.f32.xlu0 %v92
    %v94 = vpop.xlane.xlu0 %93
    %v95 = vmax.f32 %v94, 1e-24
    %v96 = vrsqrt.pop %v95
    %v97 = vmul.f32 %v91, %v96
    %s98 = scalar_lea.vmem [#allocation5], %s45
    %v99 = vld [vmem:[%s98] sm:$0xff]
    %v100 = vmul.f32 %v99, %v99
    %101 = vadd.xlane.f32.xlu0 %v100
    %v102 = vpop.xlane.xlu0 %101
    %v103 = vmax.f32 %v102, 1e-24
    %v104 = vrsqrt.pop %v103
    %v105 = vmul.f32 %v99, %v104
    %v106 = vmul.f32 %v81, %v89
    %107 = vadd.xlane.f32.xlu0 %v106
    %v108 = vpop.xlane.xlu0 %107
    %v109 = vsub.f32 %v108, 1.0
    %v110 = vmul.f32 %v109, 10.0
    %v111 = vmul.f32 %v110, 1.442695
    %v112 = vpow.pop %v111
    %v113 = vmul.f32 %v81, %v97
    %114 = vadd.xlane.f32.xlu0 %v113
    %v115 = vpop.xlane.xlu0 %114
    %v116 = vsub.f32 %v115, 1.0
    %v117 = vmul.f32 %v116, 10.0
    %v118 = vmul.f32 %v117, 1.442695
    %v119 = vpow.pop %v118
    %v120 = vmul.f32 %v81, %v105
    %121 = vadd.xlane.f32.xlu0 %v120
    %v122 = vpop.xlane.xlu0 %121
    %v123 = vsub.f32 %v122, 1.0
    %v124 = vmul.f32 %v123, 10.0
    %v125 = vmul.f32 %v124, 1.442695
    %v126 = vpow.pop %v125
    %v127 = vmul.f32 %v89, %v97
    %128 = vadd.xlane.f32.xlu0 %v127
    %v129 = vpop.xlane.xlu0 %128
    %v130 = vsub.f32 %v129, 1.0
    %v131 = vmul.f32 %v130, 10.0
    %v132 = vmul.f32 %v131, 1.442695
    %v133 = vpow.pop %v132
    %v134 = vmul.f32 %v89, %v105
    %135 = vadd.xlane.f32.xlu0 %v134
    %v136 = vpop.xlane.xlu0 %135
    %v137 = vsub.f32 %v136, 1.0
    %v138 = vmul.f32 %v137, 10.0
    %v139 = vmul.f32 %v138, 1.442695
    %v140 = vpow.pop %v139
    %v141 = vmul.f32 %v97, %v105
    %142 = vadd.xlane.f32.xlu0 %v141
    %v143 = vpop.xlane.xlu0 %142
    %v144 = vsub.f32 %v143, 1.0
    %v145 = vmul.f32 %v144, 10.0
    %v146 = vmul.f32 %v145, 1.442695
    %v147 = vpow.pop %v146
    %v148 = vadd.f32 %v112, %v119
    %v149 = vadd.f32 %v148, %v126
    %v150 = vadd.f32 %v112, %v133
    %v151 = vadd.f32 %v150, %v140
    %v152 = vadd.f32 %v119, %v133
    %v153 = vadd.f32 %v152, %v147
    %v154 = vadd.f32 %v126, %v140
    %v155 = vadd.f32 %v154, %v147
    %v156 = vmul.f32 %v81, 10.0
    %v157 = vmul.f32 %v89, 10.0
    %v158 = vmul.f32 %v97, 10.0
    %v159 = vmul.f32 %v105, 10.0
    %v160 = vlaneseq
    %v161 = vshrl.u32 %v160, 7
    %v162 = vstv %s45
    %v163 = vadd.s32 %v162, %v161
    %v164 = vlaneseq
    %v165 = vand.u32 %v164, 127
    %vm166 = vcmp.ne.s32.totalorder %v165, %v163
    %vm167 = vcmp.lt.s32.totalorder %v165, 4
    %vm168 = vmand %vm166, %vm167
    %v169 = vsel %vm168, 1, 0
    %v170 = vcvt.s32.f32 %v169
    %171 = vmatprep.subr.mxu0 0.0
    %172 = vmatpush1.xpose.msra.mxu0 %v52
    %173 = vmatprep.subr.mxu0 0.0
    %174 = vmatpush1.xpose.msra.mxu0 0.0
    %175 = vmatprep.subr.mxu0 0.0
    %176 = vmatpush1.xpose.msra.mxu0 0.0
    %177 = vmatprep.subr.mxu0 0.0
    %178 = vmatpush1.xpose.msra.mxu0 0.0
    %179 = vmatprep.subr.mxu0 0.0
    %180 = vmatpush1.xpose.msra.mxu0 0.0
    %181 = vmatprep.subr.mxu0 0.0
    %182 = vmatpush1.xpose.msra.mxu0 0.0
    %183 = vmatprep.subr.mxu0 0.0
    %184 = vmatpush1.xpose.msra.mxu0 0.0
    %185 = vmatprep.subr.mxu0 0.0
    %186 = vmatpush1.xpose.msra.mxu0 0.0
    %187 = vmatprep.subr.mxu0 0.0
    %188 = vmatpush1.xpose.msra.mxu0 0.0
    %189 = vmatprep.subr.mxu0 0.0
    %190 = vmatpush1.xpose.msra.mxu0 0.0
    %191 = vmatprep.subr.mxu0 0.0
    %192 = vmatpush1.xpose.msra.mxu0 0.0
    %193 = vmatprep.subr.mxu0 0.0
    %194 = vmatpush1.xpose.msra.mxu0 0.0
    %195 = vmatprep.subr.mxu0 0.0
    %196 = vmatpush1.xpose.msra.mxu0 0.0
    %197 = vmatprep.subr.mxu0 0.0
    %198 = vmatpush1.xpose.msra.mxu0 0.0
    %199 = vmatprep.subr.mxu0 0.0
    %200 = vmatpush1.xpose.msra.mxu0 0.0
    %201 = vmatprep.subr.mxu0 0.0
    %202 = vmatpush1.xpose.msra.mxu0 0.0
    %203 = vmatprep.subr.mxu0 0.0
    %204 = vmatpush1.xpose.msra.mxu0 0.0
    %205 = vmatprep.subr.mxu0 0.0
    %206 = vmatpush1.xpose.msra.mxu0 0.0
    %207 = vmatprep.subr.mxu0 0.0
    %208 = vmatpush1.xpose.msra.mxu0 0.0
    %209 = vmatprep.subr.mxu0 0.0
    %210 = vmatpush1.xpose.msra.mxu0 0.0
    %211 = vmatprep.subr.mxu0 0.0
    %212 = vmatpush1.xpose.msra.mxu0 0.0
    %213 = vmatprep.subr.mxu0 0.0
    %214 = vmatpush1.xpose.msra.mxu0 0.0
    %215 = vmatprep.subr.mxu0 0.0
    %216 = vmatpush1.xpose.msra.mxu0 0.0
    %217 = vmatprep.subr.mxu0 0.0
    %218 = vmatpush1.xpose.msra.mxu0 0.0
    %219 = vmatprep.subr.mxu0 0.0
    %220 = vmatpush1.xpose.msra.mxu0 0.0
    %221 = vmatprep.subr.mxu0 0.0
    %222 = vmatpush1.xpose.msra.mxu0 0.0
    %223 = vmatprep.subr.mxu0 0.0
    %224 = vmatpush1.xpose.msra.mxu0 0.0
    %225 = vmatprep.subr.mxu0 0.0
    %226 = vmatpush1.xpose.msra.mxu0 0.0
    %227 = vmatprep.subr.mxu0 0.0
    %228 = vmatpush1.xpose.msra.mxu0 0.0
    %229 = vmatprep.subr.mxu0 0.0
    %230 = vmatpush1.xpose.msra.mxu0 0.0
    %231 = vmatprep.subr.mxu0 0.0
    %232 = vmatpush1.xpose.msra.mxu0 0.0
    %233 = vmatprep.subr.mxu0 0.0
    %234 = vmatpush1.xpose.msra.mxu0 0.0
    %235 = vmatprep.mubr.f32.mxu0 0.0
    %236 = vmatmul.mubr.f32.gmra.mrb[0].mxu0 %v156
    %v237 = vpop.f32.mrb[0].mxu0
    %v238 = vadd.f32 0.0, %v237
    %v239 = vpop.f32.mrb[0].mxu0
    %240 = vmatprep.mubr.f32.mxu0 0.0
    %241 = vmatmul.mubr.f32.gmra.mrb[0].mxu0 %v157
    %v242 = vpop.f32.mrb[0].mxu0
    %v243 = vadd.f32 0.0, %v242
    %v244 = vpop.f32.mrb[0].mxu0
    %245 = vmatprep.mubr.f32.mxu0 0.0
    %246 = vmatmul.mubr.f32.gmra.mrb[0].mxu0 %v158
    %v247 = vpop.f32.mrb[0].mxu0
    %v248 = vadd.f32 0.0, %v247
    %v249 = vpop.f32.mrb[0].mxu0
    %250 = vmatprep.mubr.f32.mxu0 0.0
    %251 = vmatmul.mubr.f32.gmra.mrb[0].mxu0 %v159
    %v252 = vpop.f32.mrb[0].mxu0
    %v253 = vadd.f32 0.0, %v252
    %v254 = vpop.f32.mrb[0].mxu0
    %255 = vdwg.mxu0
    %v256 = vsub.f32 %v238, 10.0
    %v257 = vsub.f32 %v243, 10.0
    %v258 = vsub.f32 %v248, 10.0
    %v259 = vsub.f32 %v253, 10.0
    %v260 = vmul.f32 %v256, 1.442695
    %v261 = vpow.pop %v260
    %v262 = vmul.f32 %v257, 1.442695
    %v263 = vpow.pop %v262
    %v264 = vmul.f32 %v258, 1.442695
    %v265 = vpow.pop %v264
    %v266 = vmul.f32 %v259, 1.442695
    %v267 = vpow.pop %v266
    %v268 = vmul.f32 %v261, %v170
    %v269 = vmul.f32 %v263, %v170
    %v270 = vmul.f32 %v265, %v170
    %v271 = vmul.f32 %v267, %v170
    %vm272 = vcmask 64512
    %v273 = vsel %vm272, %v268, 0.0
    %274 = vadd.xlane.f32.xlu0 %v273
    %v275 = vpop.xlane.xlu0 %274
    %v276 = vsel %vm272, %v269, 0.0
    %277 = vadd.xlane.f32.xlu0 %v276
    %v278 = vpop.xlane.xlu0 %277
    %v279 = vsel %vm272, %v270, 0.0
    %280 = vadd.xlane.f32.xlu0 %v279
    %v281 = vpop.xlane.xlu0 %280
    %v282 = vsel %vm272, %v271, 0.0
    %283 = vadd.xlane.f32.xlu0 %v282
    %v284 = vpop.xlane.xlu0 %283
    %v285 = vadd.f32 %v275, 0.0
    %v286 = vadd.f32 %v278, 0.0
    %v287 = vadd.f32 %v281, 0.0
    %v288 = vadd.f32 %v284, 0.0
    %289 = vmatprep.subr.mxu0 0.0
    %290 = vmatpush1.xpose.msra.mxu0 %v59
    %291 = vmatprep.subr.mxu0 0.0
    %292 = vmatpush1.xpose.msra.mxu0 0.0
    %293 = vmatprep.subr.mxu0 0.0
    %294 = vmatpush1.xpose.msra.mxu0 0.0
    %295 = vmatprep.subr.mxu0 0.0
    %296 = vmatpush1.xpose.msra.mxu0 0.0
    %297 = vmatprep.subr.mxu0 0.0
    %298 = vmatpush1.xpose.msra.mxu0 0.0
    %299 = vmatprep.subr.mxu0 0.0
    %300 = vmatpush1.xpose.msra.mxu0 0.0
    %301 = vmatprep.subr.mxu0 0.0
    %302 = vmatpush1.xpose.msra.mxu0 0.0
    %303 = vmatprep.subr.mxu0 0.0
    %304 = vmatpush1.xpose.msra.mxu0 0.0
    %305 = vmatprep.subr.mxu0 0.0
    %306 = vmatpush1.xpose.msra.mxu0 0.0
    %307 = vmatprep.subr.mxu0 0.0
    %308 = vmatpush1.xpose.msra.mxu0 0.0
    %309 = vmatprep.subr.mxu0 0.0
    %310 = vmatpush1.xpose.msra.mxu0 0.0
    %311 = vmatprep.subr.mxu0 0.0
    %312 = vmatpush1.xpose.msra.mxu0 0.0
    %313 = vmatprep.subr.mxu0 0.0
    %314 = vmatpush1.xpose.msra.mxu0 0.0
    %315 = vmatprep.subr.mxu0 0.0
    %316 = vmatpush1.xpose.msra.mxu0 0.0
    %317 = vmatprep.subr.mxu0 0.0
    %318 = vmatpush1.xpose.msra.mxu0 0.0
    %319 = vmatprep.subr.mxu0 0.0
    %320 = vmatpush1.xpose.msra.mxu0 0.0
    %321 = vmatprep.subr.mxu0 0.0
    %322 = vmatpush1.xpose.msra.mxu0 0.0
    %323 = vmatprep.subr.mxu0 0.0
    %324 = vmatpush1.xpose.msra.mxu0 0.0
    %325 = vmatprep.subr.mxu0 0.0
    %326 = vmatpush1.xpose.msra.mxu0 0.0
    %327 = vmatprep.subr.mxu0 0.0
    %328 = vmatpush1.xpose.msra.mxu0 0.0
    %329 = vmatprep.subr.mxu0 0.0
    %330 = vmatpush1.xpose.msra.mxu0 0.0
    %331 = vmatprep.subr.mxu0 0.0
    %332 = vmatpush1.xpose.msra.mxu0 0.0
    %333 = vmatprep.subr.mxu0 0.0
    %334 = vmatpush1.xpose.msra.mxu0 0.0
    %335 = vmatprep.subr.mxu0 0.0
    %336 = vmatpush1.xpose.msra.mxu0 0.0
    %337 = vmatprep.subr.mxu0 0.0
    %338 = vmatpush1.xpose.msra.mxu0 0.0
    %339 = vmatprep.subr.mxu0 0.0
    %340 = vmatpush1.xpose.msra.mxu0 0.0
    %341 = vmatprep.subr.mxu0 0.0
    %342 = vmatpush1.xpose.msra.mxu0 0.0
    %343 = vmatprep.subr.mxu0 0.0
    %344 = vmatpush1.xpose.msra.mxu0 0.0
    %345 = vmatprep.subr.mxu0 0.0
    %346 = vmatpush1.xpose.msra.mxu0 0.0
    %347 = vmatprep.subr.mxu0 0.0
    %348 = vmatpush1.xpose.msra.mxu0 0.0
    %349 = vmatprep.subr.mxu0 0.0
    %350 = vmatpush1.xpose.msra.mxu0 0.0
    %351 = vmatprep.subr.mxu0 0.0
    %352 = vmatpush1.xpose.msra.mxu0 0.0
    %353 = vmatprep.mubr.f32.mxu0 0.0
    %354 = vmatmul.mubr.f32.gmra.mrb[0].mxu0 %v156
    %v355 = vpop.f32.mrb[0].mxu0
    %v356 = vadd.f32 0.0, %v355
    %v357 = vpop.f32.mrb[0].mxu0
    %358 = vmatprep.mubr.f32.mxu0 0.0
    %359 = vmatmul.mubr.f32.gmra.mrb[0].mxu0 %v157
    %v360 = vpop.f32.mrb[0].mxu0
    %v361 = vadd.f32 0.0, %v360
    %v362 = vpop.f32.mrb[0].mxu0
    %363 = vmatprep.mubr.f32.mxu0 0.0
    %364 = vmatmul.mubr.f32.gmra.mrb[0].mxu0 %v158
    %v365 = vpop.f32.mrb[0].mxu0
    %v366 = vadd.f32 0.0, %v365
    %v367 = vpop.f32.mrb[0].mxu0
    %368 = vmatprep.mubr.f32.mxu0 0.0
    %369 = vmatmul.mubr.f32.gmra.mrb[0].mxu0 %v159
    %v370 = vpop.f32.mrb[0].mxu0
    %v371 = vadd.f32 0.0, %v370
    %v372 = vpop.f32.mrb[0].mxu0
    %373 = vdwg.mxu0
    %v374 = vsub.f32 %v356, 10.0
    %v375 = vsub.f32 %v361, 10.0
    %v376 = vsub.f32 %v366, 10.0
    %v377 = vsub.f32 %v371, 10.0
    %v378 = vmul.f32 %v374, 1.442695
    %v379 = vpow.pop %v378
    %v380 = vmul.f32 %v375, 1.442695
    %v381 = vpow.pop %v380
    %v382 = vmul.f32 %v376, 1.442695
    %v383 = vpow.pop %v382
    %v384 = vmul.f32 %v377, 1.442695
    %v385 = vpow.pop %v384
    %v386 = vmul.f32 %v379, %v170
    %v387 = vmul.f32 %v381, %v170
    %v388 = vmul.f32 %v383, %v170
    %v389 = vmul.f32 %v385, %v170
    %v390 = vsel %vm272, %v386, 0.0
    %391 = vadd.xlane.f32.xlu0 %v390
    %v392 = vpop.xlane.xlu0 %391
    %v393 = vsel %vm272, %v387, 0.0
    %394 = vadd.xlane.f32.xlu0 %v393
    %v395 = vpop.xlane.xlu0 %394
    %v396 = vsel %vm272, %v388, 0.0
    %397 = vadd.xlane.f32.xlu0 %v396
    %v398 = vpop.xlane.xlu0 %397
    %v399 = vsel %vm272, %v389, 0.0
    %400 = vadd.xlane.f32.xlu0 %v399
    %v401 = vpop.xlane.xlu0 %400
    %v402 = vadd.f32 %v285, %v392
    %v403 = vadd.f32 %v286, %v395
    %v404 = vadd.f32 %v287, %v398
    %v405 = vadd.f32 %v288, %v401
    %406 = vmatprep.subr.mxu0 0.0
    %407 = vmatpush1.xpose.msra.mxu0 %v66
    %408 = vmatprep.subr.mxu0 0.0
    %409 = vmatpush1.xpose.msra.mxu0 0.0
    %410 = vmatprep.subr.mxu0 0.0
    %411 = vmatpush1.xpose.msra.mxu0 0.0
    %412 = vmatprep.subr.mxu0 0.0
    %413 = vmatpush1.xpose.msra.mxu0 0.0
    %414 = vmatprep.subr.mxu0 0.0
    %415 = vmatpush1.xpose.msra.mxu0 0.0
    %416 = vmatprep.subr.mxu0 0.0
    %417 = vmatpush1.xpose.msra.mxu0 0.0
    %418 = vmatprep.subr.mxu0 0.0
    %419 = vmatpush1.xpose.msra.mxu0 0.0
    %420 = vmatprep.subr.mxu0 0.0
    %421 = vmatpush1.xpose.msra.mxu0 0.0
    %422 = vmatprep.subr.mxu0 0.0
    %423 = vmatpush1.xpose.msra.mxu0 0.0
    %424 = vmatprep.subr.mxu0 0.0
    %425 = vmatpush1.xpose.msra.mxu0 0.0
    %426 = vmatprep.subr.mxu0 0.0
    %427 = vmatpush1.xpose.msra.mxu0 0.0
    %428 = vmatprep.subr.mxu0 0.0
    %429 = vmatpush1.xpose.msra.mxu0 0.0
    %430 = vmatprep.subr.mxu0 0.0
    %431 = vmatpush1.xpose.msra.mxu0 0.0
    %432 = vmatprep.subr.mxu0 0.0
    %433 = vmatpush1.xpose.msra.mxu0 0.0
    %434 = vmatprep.subr.mxu0 0.0
    %435 = vmatpush1.xpose.msra.mxu0 0.0
    %436 = vmatprep.subr.mxu0 0.0
    %437 = vmatpush1.xpose.msra.mxu0 0.0
    %438 = vmatprep.subr.mxu0 0.0
    %439 = vmatpush1.xpose.msra.mxu0 0.0
    %440 = vmatprep.subr.mxu0 0.0
    %441 = vmatpush1.xpose.msra.mxu0 0.0
    %442 = vmatprep.subr.mxu0 0.0
    %443 = vmatpush1.xpose.msra.mxu0 0.0
    %444 = vmatprep.subr.mxu0 0.0
    %445 = vmatpush1.xpose.msra.mxu0 0.0
    %446 = vmatprep.subr.mxu0 0.0
    %447 = vmatpush1.xpose.msra.mxu0 0.0
    %448 = vmatprep.subr.mxu0 0.0
    %449 = vmatpush1.xpose.msra.mxu0 0.0
    %450 = vmatprep.subr.mxu0 0.0
    %451 = vmatpush1.xpose.msra.mxu0 0.0
    %452 = vmatprep.subr.mxu0 0.0
    %453 = vmatpush1.xpose.msra.mxu0 0.0
    %454 = vmatprep.subr.mxu0 0.0
    %455 = vmatpush1.xpose.msra.mxu0 0.0
    %456 = vmatprep.subr.mxu0 0.0
    %457 = vmatpush1.xpose.msra.mxu0 0.0
    %458 = vmatprep.subr.mxu0 0.0
    %459 = vmatpush1.xpose.msra.mxu0 0.0
    %460 = vmatprep.subr.mxu0 0.0
    %461 = vmatpush1.xpose.msra.mxu0 0.0
    %462 = vmatprep.subr.mxu0 0.0
    %463 = vmatpush1.xpose.msra.mxu0 0.0
    %464 = vmatprep.subr.mxu0 0.0
    %465 = vmatpush1.xpose.msra.mxu0 0.0
    %466 = vmatprep.subr.mxu0 0.0
    %467 = vmatpush1.xpose.msra.mxu0 0.0
    %468 = vmatprep.subr.mxu0 0.0
    %469 = vmatpush1.xpose.msra.mxu0 0.0
    %470 = vmatprep.mubr.f32.mxu0 0.0
    %471 = vmatmul.mubr.f32.gmra.mrb[0].mxu0 %v156
    %v472 = vpop.f32.mrb[0].mxu0
    %v473 = vadd.f32 0.0, %v472
    %v474 = vpop.f32.mrb[0].mxu0
    %475 = vmatprep.mubr.f32.mxu0 0.0
    %476 = vmatmul.mubr.f32.gmra.mrb[0].mxu0 %v157
    %v477 = vpop.f32.mrb[0].mxu0
    %v478 = vadd.f32 0.0, %v477
    %v479 = vpop.f32.mrb[0].mxu0
    %480 = vmatprep.mubr.f32.mxu0 0.0
    %481 = vmatmul.mubr.f32.gmra.mrb[0].mxu0 %v158
    %v482 = vpop.f32.mrb[0].mxu0
    %v483 = vadd.f32 0.0, %v482
    %v484 = vpop.f32.mrb[0].mxu0
    %485 = vmatprep.mubr.f32.mxu0 0.0
    %486 = vmatmul.mubr.f32.gmra.mrb[0].mxu0 %v159
    %v487 = vpop.f32.mrb[0].mxu0
    %v488 = vadd.f32 0.0, %v487
    %v489 = vpop.f32.mrb[0].mxu0
    %490 = vdwg.mxu0
    %v491 = vsub.f32 %v473, 10.0
    %v492 = vsub.f32 %v478, 10.0
    %v493 = vsub.f32 %v483, 10.0
    %v494 = vsub.f32 %v488, 10.0
    %v495 = vmul.f32 %v491, 1.442695
    %v496 = vpow.pop %v495
    %v497 = vmul.f32 %v492, 1.442695
    %v498 = vpow.pop %v497
    %v499 = vmul.f32 %v493, 1.442695
    %v500 = vpow.pop %v499
    %v501 = vmul.f32 %v494, 1.442695
    %v502 = vpow.pop %v501
    %v503 = vmul.f32 %v496, %v170
    %v504 = vmul.f32 %v498, %v170
    %v505 = vmul.f32 %v500, %v170
    %v506 = vmul.f32 %v502, %v170
    %v507 = vsel %vm272, %v503, 0.0
    %508 = vadd.xlane.f32.xlu0 %v507
    %v509 = vpop.xlane.xlu0 %508
    %v510 = vsel %vm272, %v504, 0.0
    %511 = vadd.xlane.f32.xlu0 %v510
    %v512 = vpop.xlane.xlu0 %511
    %v513 = vsel %vm272, %v505, 0.0
    %514 = vadd.xlane.f32.xlu0 %v513
    %v515 = vpop.xlane.xlu0 %514
    %v516 = vsel %vm272, %v506, 0.0
    %517 = vadd.xlane.f32.xlu0 %v516
    %v518 = vpop.xlane.xlu0 %517
    %v519 = vadd.f32 %v402, %v509
    %v520 = vadd.f32 %v403, %v512
    %v521 = vadd.f32 %v404, %v515
    %v522 = vadd.f32 %v405, %v518
    %523 = vmatprep.subr.mxu0 0.0
    %524 = vmatpush1.xpose.msra.mxu0 %v73
    %525 = vmatprep.subr.mxu0 0.0
    %526 = vmatpush1.xpose.msra.mxu0 0.0
    %527 = vmatprep.subr.mxu0 0.0
    %528 = vmatpush1.xpose.msra.mxu0 0.0
    %529 = vmatprep.subr.mxu0 0.0
    %530 = vmatpush1.xpose.msra.mxu0 0.0
    %531 = vmatprep.subr.mxu0 0.0
    %532 = vmatpush1.xpose.msra.mxu0 0.0
    %533 = vmatprep.subr.mxu0 0.0
    %534 = vmatpush1.xpose.msra.mxu0 0.0
    %535 = vmatprep.subr.mxu0 0.0
    %536 = vmatpush1.xpose.msra.mxu0 0.0
    %537 = vmatprep.subr.mxu0 0.0
    %538 = vmatpush1.xpose.msra.mxu0 0.0
    %539 = vmatprep.subr.mxu0 0.0
    %540 = vmatpush1.xpose.msra.mxu0 0.0
    %541 = vmatprep.subr.mxu0 0.0
    %542 = vmatpush1.xpose.msra.mxu0 0.0
    %543 = vmatprep.subr.mxu0 0.0
    %544 = vmatpush1.xpose.msra.mxu0 0.0
    %545 = vmatprep.subr.mxu0 0.0
    %546 = vmatpush1.xpose.msra.mxu0 0.0
    %547 = vmatprep.subr.mxu0 0.0
    %548 = vmatpush1.xpose.msra.mxu0 0.0
    %549 = vmatprep.subr.mxu0 0.0
    %550 = vmatpush1.xpose.msra.mxu0 0.0
    %551 = vmatprep.subr.mxu0 0.0
    %552 = vmatpush1.xpose.msra.mxu0 0.0
    %553 = vmatprep.subr.mxu0 0.0
    %554 = vmatpush1.xpose.msra.mxu0 0.0
    %555 = vmatprep.subr.mxu0 0.0
    %556 = vmatpush1.xpose.msra.mxu0 0.0
    %557 = vmatprep.subr.mxu0 0.0
    %558 = vmatpush1.xpose.msra.mxu0 0.0
    %559 = vmatprep.subr.mxu0 0.0
    %560 = vmatpush1.xpose.msra.mxu0 0.0
    %561 = vmatprep.subr.mxu0 0.0
    %562 = vmatpush1.xpose.msra.mxu0 0.0
    %563 = vmatprep.subr.mxu0 0.0
    %564 = vmatpush1.xpose.msra.mxu0 0.0
    %565 = vmatprep.subr.mxu0 0.0
    %566 = vmatpush1.xpose.msra.mxu0 0.0
    %567 = vmatprep.subr.mxu0 0.0
    %568 = vmatpush1.xpose.msra.mxu0 0.0
    %569 = vmatprep.subr.mxu0 0.0
    %570 = vmatpush1.xpose.msra.mxu0 0.0
    %571 = vmatprep.subr.mxu0 0.0
    %572 = vmatpush1.xpose.msra.mxu0 0.0
    %573 = vmatprep.subr.mxu0 0.0
    %574 = vmatpush1.xpose.msra.mxu0 0.0
    %575 = vmatprep.subr.mxu0 0.0
    %576 = vmatpush1.xpose.msra.mxu0 0.0
    %577 = vmatprep.subr.mxu0 0.0
    %578 = vmatpush1.xpose.msra.mxu0 0.0
    %579 = vmatprep.subr.mxu0 0.0
    %580 = vmatpush1.xpose.msra.mxu0 0.0
    %581 = vmatprep.subr.mxu0 0.0
    %582 = vmatpush1.xpose.msra.mxu0 0.0
    %583 = vmatprep.subr.mxu0 0.0
    %584 = vmatpush1.xpose.msra.mxu0 0.0
    %585 = vmatprep.subr.mxu0 0.0
    %586 = vmatpush1.xpose.msra.mxu0 0.0
    %587 = vmatprep.mubr.f32.mxu0 0.0
    %588 = vmatmul.mubr.f32.gmra.mrb[0].mxu0 %v156
    %v589 = vpop.f32.mrb[0].mxu0
    %v590 = vadd.f32 0.0, %v589
    %v591 = vpop.f32.mrb[0].mxu0
    %592 = vmatprep.mubr.f32.mxu0 0.0
    %593 = vmatmul.mubr.f32.gmra.mrb[0].mxu0 %v157
    %v594 = vpop.f32.mrb[0].mxu0
    %v595 = vadd.f32 0.0, %v594
    %v596 = vpop.f32.mrb[0].mxu0
    %597 = vmatprep.mubr.f32.mxu0 0.0
    %598 = vmatmul.mubr.f32.gmra.mrb[0].mxu0 %v158
    %v599 = vpop.f32.mrb[0].mxu0
    %v600 = vadd.f32 0.0, %v599
    %v601 = vpop.f32.mrb[0].mxu0
    %602 = vmatprep.mubr.f32.mxu0 0.0
    %603 = vmatmul.mubr.f32.gmra.mrb[0].mxu0 %v159
    %v604 = vpop.f32.mrb[0].mxu0
    %v605 = vadd.f32 0.0, %v604
    %v606 = vpop.f32.mrb[0].mxu0
    %607 = vdwg.mxu0
    %v608 = vsub.f32 %v590, 10.0
    %v609 = vsub.f32 %v595, 10.0
    %v610 = vsub.f32 %v600, 10.0
    %v611 = vsub.f32 %v605, 10.0
    %v612 = vmul.f32 %v608, 1.442695
    %v613 = vpow.pop %v612
    %v614 = vmul.f32 %v609, 1.442695
    %v615 = vpow.pop %v614
    %v616 = vmul.f32 %v610, 1.442695
    %v617 = vpow.pop %v616
    %v618 = vmul.f32 %v611, 1.442695
    %v619 = vpow.pop %v618
    %v620 = vmul.f32 %v613, %v170
    %v621 = vmul.f32 %v615, %v170
    %v622 = vmul.f32 %v617, %v170
    %v623 = vmul.f32 %v619, %v170
    %v624 = vsel %vm272, %v620, 0.0
    %625 = vadd.xlane.f32.xlu0 %v624
    %v626 = vpop.xlane.xlu0 %625
    %v627 = vsel %vm272, %v621, 0.0
    %628 = vadd.xlane.f32.xlu0 %v627
    %v629 = vpop.xlane.xlu0 %628
    %v630 = vsel %vm272, %v622, 0.0
    %631 = vadd.xlane.f32.xlu0 %v630
    %v632 = vpop.xlane.xlu0 %631
    %v633 = vsel %vm272, %v623, 0.0
    %634 = vadd.xlane.f32.xlu0 %v633
    %v635 = vpop.xlane.xlu0 %634
    %v636 = vadd.f32 %v519, %v626
    %v637 = vadd.f32 %v520, %v629
    %v638 = vadd.f32 %v521, %v632
    %v639 = vadd.f32 %v522, %v635
    %v640 = vadd.f32 %v149, %v636
    %v641 = vlog2.pop %v640
    %v642 = vmul.f32 %v641, 0.6931472
    %v643 = vlog2.pop %v149
    %v644 = vmul.f32 %v643, 0.6931472
    %v645 = vsub.f32 %v642, %v644
    %v646 = vadd.f32 %v645, 0.0
    %v647 = vadd.f32 %v151, %v637
    %v648 = vlog2.pop %v647
    %v649 = vmul.f32 %v648, 0.6931472
    %v650 = vlog2.pop %v151
    %v651 = vmul.f32 %v650, 0.6931472
    %v652 = vsub.f32 %v649, %v651
    %v653 = vadd.f32 %v646, %v652
    %v654 = vadd.f32 %v153, %v638
    %v655 = vlog2.pop %v654
    %v656 = vmul.f32 %v655, 0.6931472
    %v657 = vlog2.pop %v153
    %v658 = vmul.f32 %v657, 0.6931472
    %v659 = vsub.f32 %v656, %v658
    %v660 = vadd.f32 %v653, %v659
    %v661 = vadd.f32 %v155, %v639
    %v662 = vlog2.pop %v661
    %v663 = vmul.f32 %v662, 0.6931472
    %v664 = vlog2.pop %v155
    %v665 = vmul.f32 %v664, 0.6931472
    %v666 = vsub.f32 %v663, %v665
    %v667 = vadd.f32 %v660, %v666
    %v668 = vld [vmem:[%s4] sm:$0xff]
    %670 = vset.pattern.permute.xlu0 0
    %671 = vperm.xlu0 %670, %v668
    %v672 = vpop.permute.xlu0 %671
    %v674 = vmul.f32 %v672, %v81
    %v675 = vsub.f32 1.0, %v668
    %677 = vset.pattern.permute.xlu0 0
    %678 = vperm.xlu0 %677, %v675
    %v679 = vpop.permute.xlu0 %678
    %v681 = vmul.f32 %v679, %v89
    %v682 = vadd.f32 %v674, %v681
    %v683 = vmul.f32 %v679, %v81
    %v684 = vmul.f32 %v672, %v89
    %v685 = vadd.f32 %v683, %v684
    %v686 = vsub.f32 %v97, %v682
    %v687 = vmul.f32 %v686, %v686
    %688 = vadd.xlane.f32.xlu0 %v687
    %v689 = vpop.xlane.xlu0 %688
    %v690 = vrsqrt.pop %v689
    %v691 = vmul.f32 %v689, %v690
    %vm692 = vcmp.eq.f32.partialorder %v689, inf
    %v693 = vsel %vm692, %v689, %v691
    %vm694 = vcmp.eq.f32.partialorder %v689, 0.0
    %v695 = vand.u32 %v689, 2147483648
    %v696 = vsel %vm694, %v695, %v693
    %v697 = vsub.f32 %v105, %v685
    %v698 = vmul.f32 %v697, %v697
    %699 = vadd.xlane.f32.xlu0 %v698
    %v700 = vpop.xlane.xlu0 %699
    %v701 = vrsqrt.pop %v700
    %v702 = vmul.f32 %v700, %v701
    %vm703 = vcmp.eq.f32.partialorder %v700, inf
    %v704 = vsel %vm703, %v700, %v702
    %vm705 = vcmp.eq.f32.partialorder %v700, 0.0
    %v706 = vand.u32 %v700, 2147483648
    %v707 = vsel %vm705, %v706, %v704
    %v708 = vadd.f32 %v696, %v707
    %vm709 = vcmp.lt.s32.totalorder %v163, 4
    %v710 = vmul.f32 %v708, 0.5
    %v711 = vadd.f32 %v667, %v710
    %v712 = vsel %vm709, %v711, 0.0
    %713 = vst [vmem:[#allocation7] sm:$0xff] %v712
    // Predicated region
    $region30: #{tpu_custom_call.1} parent=1 // pred_check
      _
    $region31: #{tpu_custom_call.1} parent=1 // pred_check_branch
      %715 = sbr.rel (0) target = $region33
    $region32: #{tpu_custom_call.1} parent=1 // pred_region
      %s717 = ssub.s32 128, 128
      %718 = vsyncadd [#allocation4], %s717
      %s720 = sshll.u32 [#allocation7], 4
      %s721 = int_to_ptr.vmem [resolvable:$true] %s720
      %723 = dma.vmem_to_hbm [thread:$0]  %s721, 128, %s5, [#allocation4]
    $region33: #{tpu_custom_call.1} parent=1 // pred_fallthru
      _
    // Predicated region
    $region34: #{tpu_custom_call.1} parent=1 // pred_check
      _
    $region35: #{tpu_custom_call.1} parent=1 // pred_check_branch
      %725 = sbr.rel (0) target = $region37
    $region36: #{tpu_custom_call.1} parent=1 // pred_region
      %726 = dma.done [#allocation4], 128
    $region37: #{tpu_custom_call.1} parent=1 // pred_fallthru
      _
    %727 = vsyncpa [#allocation3], 1
    %728 = vsyncpa [#allocation6], 1
    %729 = vsyncpa [#allocation4], 1

</llo_original>
